<compile_context>
chip_gen: v6e
topology: v6e:2x2x1
jax: 0.10.0
libtpu: 0.0.40
codegen_flags: <defaults>
</compile_context>

<pallas_src>
import functools

import jax
import jax.numpy as jnp
from jax.experimental import pallas as pl
from jax.experimental.pallas import tpu as pltpu


def _round_up(n, m):
    return ((n + m - 1) // m) * m


def _disc_kernel(x_ref, w1_ref, b1_ref, w2_ref, b2_ref, w3_ref, b3_ref, out_ref,
                 *, compute_dtype):
    x = x_ref[...].astype(compute_dtype)
    # fc1 + relu
    h1 = jnp.dot(x, w1_ref[...].astype(compute_dtype),
                 preferred_element_type=jnp.float32) + b1_ref[...]
    h1 = jnp.maximum(h1, 0.0)
    # fc2 + relu
    h2 = jnp.dot(h1.astype(compute_dtype), w2_ref[...].astype(compute_dtype),
                 preferred_element_type=jnp.float32) + b2_ref[...]
    h2 = jnp.maximum(h2, 0.0)
    # fc3 + 2*tanh  (tanh goes to the EUP slot -> effectively free)
    o = jnp.dot(h2.astype(compute_dtype), w3_ref[...].astype(compute_dtype),
                preferred_element_type=jnp.float32) + b3_ref[...]
    out_ref[...] = 2.0 * jnp.tanh(o)


@functools.partial(jax.jit, static_argnames=("tile_b", "use_bf16"))
def discriminator_forward(x, params, tile_b=None, use_bf16=False):
    """x: (B, num_input); params: dict of w1,b1,w2,b2,w3,b3 (unpadded)."""
    w1, b1 = params["w1"], params["b1"]
    w2, b2 = params["w2"], params["b2"]
    w3, b3 = params["w3"], params["b3"]

    x = x.astype(jnp.float32)
    B, num_input = x.shape
    num_hidden = w1.shape[1]
    num_output = w3.shape[1]

    # Batch tile: multiple of 8 sublanes.  Default targets >= 2 grid steps
    # (dual-TC sharding on v7x) and caps at 4096 rows, which keeps per-step
    # VMEM (~2 MiB) far below every generation's scoped-VMEM limit while
    # amortizing the fixed per-step overhead.
    if tile_b is None:
        tile_b = max(8, min(4096, _round_up(pl.cdiv(B, 2), 8)))
    else:
        tile_b = max(8, _round_up(int(tile_b), 8))

    b_pad = _round_up(B, tile_b)
    if b_pad != B:
        x_in = jnp.zeros((b_pad, num_input), jnp.float32).at[:B].set(x)
    else:
        x_in = x

    compute_dtype = jnp.bfloat16 if use_bf16 else jnp.float32
    grid = (b_pad // tile_b,)

    # Advisory cost estimate with the real (unpadded) dimensions.
    flops = 2 * b_pad * (num_input * num_hidden
                         + num_hidden * num_hidden
                         + num_hidden * num_output)
    bytes_accessed = 4 * (
        b_pad * num_input
        + num_input * num_hidden + num_hidden
        + num_hidden * num_hidden + num_hidden
        + num_hidden * num_output + num_output
        + b_pad * num_output
    )
    cost = pl.CostEstimate(flops=flops, transcendentals=b_pad * num_output,
                           bytes_accessed=bytes_accessed)

    kernel = functools.partial(_disc_kernel, compute_dtype=compute_dtype)

    out_padded = pl.pallas_call(
        kernel,
        grid=grid,
        in_specs=[
            # x: tiled along batch, natural feature width (full-array last dim).
            pl.BlockSpec((tile_b, num_input), lambda i: (i, 0)),
            # weights/biases: full-array blocks, VMEM-resident across the grid.
            pl.BlockSpec((num_input, num_hidden), lambda i: (0, 0)),
            pl.BlockSpec((1, num_hidden), lambda i: (0, 0)),
            pl.BlockSpec((num_hidden, num_hidden), lambda i: (0, 0)),
            pl.BlockSpec((1, num_hidden), lambda i: (0, 0)),
            pl.BlockSpec((num_hidden, num_output), lambda i: (0, 0)),
            pl.BlockSpec((1, num_output), lambda i: (0, 0)),
        ],
        out_specs=pl.BlockSpec((tile_b, num_output), lambda i: (i, 0)),
        out_shape=jax.ShapeDtypeStruct((b_pad, num_output), jnp.float32),
        compiler_params=pltpu.CompilerParams(
            dimension_semantics=("parallel",),
        ),
        cost_estimate=cost,
    )(x_in, w1, b1, w2, b2, w3, b3)

    return out_padded[:B] if b_pad != B else out_padded


def init_params(key, num_input, num_hidden, num_output=2):
    """Deterministic init mimicking nn.Linear default (uniform +/- 1/sqrt(fan_in))."""
    ks = jax.random.split(key, 6)

    def linear(kw, kb, fan_in, fan_out):
        bound = 1.0 / jnp.sqrt(fan_in)
        w = jax.random.uniform(kw, (fan_in, fan_out), jnp.float32, -bound, bound)
        b = jax.random.uniform(kb, (1, fan_out), jnp.float32, -bound, bound)
        return w, b

    w1, b1 = linear(ks[0], ks[1], num_input, num_hidden)
    w2, b2 = linear(ks[2], ks[3], num_hidden, num_hidden)
    w3, b3 = linear(ks[4], ks[5], num_hidden, num_output)
    return {"w1": w1, "b1": b1, "w2": w2, "b2": b2, "w3": w3, "b3": b3}


def _reference(x, params):
    h1 = jnp.maximum(x @ params["w1"] + params["b1"], 0.0)
    h2 = jnp.maximum(h1 @ params["w2"] + params["b2"], 0.0)
    return 2.0 * jnp.tanh(h2 @ params["w3"] + params["b3"])


# TODO(synk): dropout=True training path (nn.Dropout p=0.2) not implemented;
#             forward here matches the eval / dropout=False branch exactly.

if __name__ == "__main__":
    key = jax.random.PRNGKey(0)
    kx, kp, kx2 = jax.random.split(key, 3)

    # Small shapes consistent with the module.
    B, num_input, num_hidden, num_output = 8, 16, 32, 2
    x = jax.random.normal(kx, (B, num_input), jnp.float32)
    params = init_params(kp, num_input, num_hidden, num_output)

    out = jax.block_until_ready(discriminator_forward(x, params))
    ref = _reference(x, params)
    assert out.shape == (B, num_output)
    assert jnp.allclose(out, ref, atol=1e-5, rtol=1e-5)

    # Larger, non-multiple batch to exercise the multi-step batch grid
    # (batch padding + resident weights + pipelined x/out tiles).
    B2 = 300
    x2 = jax.random.normal(kx2, (B2, num_input), jnp.float32)
    out2 = jax.block_until_ready(discriminator_forward(x2, params, tile_b=128))
    ref2 = _reference(x2, params)
    assert out2.shape == (B2, num_output)
    assert jnp.allclose(out2, ref2, atol=1e-5, rtol=1e-5)

    # Default tile_b path (>= 2 grid steps) + optional bf16 operands (lossy).
    out3 = jax.block_until_ready(discriminator_forward(x2, params))
    assert out3.shape == (B2, num_output)
    assert jnp.allclose(out3, ref2, atol=1e-5, rtol=1e-5)
    out_bf16 = jax.block_until_ready(
        discriminator_forward(x2, params, use_bf16=True))
    assert jnp.allclose(out_bf16, ref2, atol=1e-1, rtol=5e-2)

    print("KERNEL_OK")
</pallas_src>

<mosaic_0001>
module attributes {stable_mosaic.version = 11 : i64} {
  func.func @_disc_kernel(%arg0: i32, %arg1: memref<8x16xf32, #tpu.memory_space<vmem>>, %arg2: memref<16x32xf32, #tpu.memory_space<vmem>>, %arg3: memref<1x32xf32, #tpu.memory_space<vmem>>, %arg4: memref<32x32xf32, #tpu.memory_space<vmem>>, %arg5: memref<1x32xf32, #tpu.memory_space<vmem>>, %arg6: memref<32x2xf32, #tpu.memory_space<vmem>>, %arg7: memref<1x2xf32, #tpu.memory_space<vmem>>, %arg8: memref<8x2xf32, #tpu.memory_space<vmem>>) attributes {dimension_semantics = [#tpu.dimension_semantics<parallel>], iteration_bounds = array<i64: 1>, scalar_prefetch = 0 : i64, scratch_operands = 0 : i64, tpu.core_type = #tpu.core_type<tc>, window_params = [{transform_indices = @transform_0, window_bounds = array<i64: 8, 16>}, {pipeline_mode = #tpu.pipeline_mode<synchronous>, transform_indices = @transform_1, window_bounds = array<i64: 16, 32>}, {pipeline_mode = #tpu.pipeline_mode<synchronous>, transform_indices = @transform_2, window_bounds = array<i64: 1, 32>}, {pipeline_mode = #tpu.pipeline_mode<synchronous>, transform_indices = @transform_3, window_bounds = array<i64: 32, 32>}, {pipeline_mode = #tpu.pipeline_mode<synchronous>, transform_indices = @transform_4, window_bounds = array<i64: 1, 32>}, {pipeline_mode = #tpu.pipeline_mode<synchronous>, transform_indices = @transform_5, window_bounds = array<i64: 32, 2>}, {pipeline_mode = #tpu.pipeline_mode<synchronous>, transform_indices = @transform_6, window_bounds = array<i64: 1, 2>}, {transform_indices = @transform_7, window_bounds = array<i64: 8, 2>}]} {
    %c0 = arith.constant 0 : index
    %c0_0 = arith.constant 0 : index
    %0 = vector.load %arg1[%c0, %c0_0] : memref<8x16xf32, #tpu.memory_space<vmem>>, vector<8x16xf32>
    %c0_1 = arith.constant 0 : index
    %c0_2 = arith.constant 0 : index
    %1 = vector.load %arg2[%c0_1, %c0_2] : memref<16x32xf32, #tpu.memory_space<vmem>>, vector<16x32xf32>
    %cst = arith.constant dense<0.000000e+00> : vector<8x32xf32>
    %2 = tpu.matmul %0, %1, %cst {dimension_numbers = #tpu.dot_dimension_numbers<[1], [0], [0], [1], [0, 0, 1, 1], [], []>} : vector<8x16xf32>, vector<16x32xf32>, vector<8x32xf32> -> vector<8x32xf32>
    %c0_3 = arith.constant 0 : index
    %c0_4 = arith.constant 0 : index
    %3 = vector.load %arg3[%c0_3, %c0_4] : memref<1x32xf32, #tpu.memory_space<vmem>>, vector<1x32xf32>
    %4 = vector.broadcast %3 : vector<1x32xf32> to vector<8x32xf32>
    %5 = arith.addf %2, %4 : vector<8x32xf32>
    %cst_5 = arith.constant 0.000000e+00 : f32
    %6 = vector.broadcast %cst_5 : f32 to vector<8x32xf32>
    %7 = arith.maximumf %5, %6 : vector<8x32xf32>
    %c0_6 = arith.constant 0 : index
    %c0_7 = arith.constant 0 : index
    %8 = vector.load %arg4[%c0_6, %c0_7] : memref<32x32xf32, #tpu.memory_space<vmem>>, vector<32x32xf32>
    %cst_8 = arith.constant dense<0.000000e+00> : vector<8x32xf32>
    %9 = tpu.matmul %7, %8, %cst_8 {dimension_numbers = #tpu.dot_dimension_numbers<[1], [0], [0], [1], [0, 0, 1, 1], [], []>} : vector<8x32xf32>, vector<32x32xf32>, vector<8x32xf32> -> vector<8x32xf32>
    %c0_9 = arith.constant 0 : index
    %c0_10 = arith.constant 0 : index
    %10 = vector.load %arg5[%c0_9, %c0_10] : memref<1x32xf32, #tpu.memory_space<vmem>>, vector<1x32xf32>
    %11 = vector.broadcast %10 : vector<1x32xf32> to vector<8x32xf32>
    %12 = arith.addf %9, %11 : vector<8x32xf32>
    %cst_11 = arith.constant 0.000000e+00 : f32
    %13 = vector.broadcast %cst_11 : f32 to vector<8x32xf32>
    %14 = arith.maximumf %12, %13 : vector<8x32xf32>
    %c0_12 = arith.constant 0 : index
    %c0_13 = arith.constant 0 : index
    %15 = vector.load %arg6[%c0_12, %c0_13] : memref<32x2xf32, #tpu.memory_space<vmem>>, vector<32x2xf32>
    %cst_14 = arith.constant dense<0.000000e+00> : vector<8x2xf32>
    %16 = tpu.matmul %14, %15, %cst_14 {dimension_numbers = #tpu.dot_dimension_numbers<[1], [0], [0], [1], [0, 0, 1, 1], [], []>} : vector<8x32xf32>, vector<32x2xf32>, vector<8x2xf32> -> vector<8x2xf32>
    %c0_15 = arith.constant 0 : index
    %c0_16 = arith.constant 0 : index
    %17 = vector.load %arg7[%c0_15, %c0_16] : memref<1x2xf32, #tpu.memory_space<vmem>>, vector<1x2xf32>
    %18 = vector.broadcast %17 : vector<1x2xf32> to vector<8x2xf32>
    %19 = arith.addf %16, %18 : vector<8x2xf32>
    %20 = math.tanh %19 : vector<8x2xf32>
    %cst_17 = arith.constant 2.000000e+00 : f32
    %21 = vector.broadcast %cst_17 : f32 to vector<8x2xf32>
    %22 = arith.mulf %21, %20 : vector<8x2xf32>
    %c0_18 = arith.constant 0 : index
    %c0_19 = arith.constant 0 : index
    %23 = vector.load %arg8[%c0_18, %c0_19] : memref<8x2xf32, #tpu.memory_space<vmem>>, vector<8x2xf32>
    tpu.vector_store %arg8[%c0_18, %c0_19], %22 {strides = array<i32>} : memref<8x2xf32, #tpu.memory_space<vmem>>, vector<8x2xf32>,
    return
  }
  func.func @transform_0(%arg0: i32) -> (i32, i32) {
    %c0_i32 = arith.constant 0 : i32
    %c0_i32_0 = arith.constant 0 : i32
    return %arg0, %c0_i32 : i32, i32
  }
  func.func @transform_1(%arg0: i32) -> (i32, i32) {
    %c0_i32 = arith.constant 0 : i32
    %c0_i32_0 = arith.constant 0 : i32
    %c0_i32_1 = arith.constant 0 : i32
    return %c0_i32, %c0_i32_0 : i32, i32
  }
  func.func @transform_2(%arg0: i32) -> (i32, i32) {
    %c0_i32 = arith.constant 0 : i32
    %c0_i32_0 = arith.constant 0 : i32
    %c0_i32_1 = arith.constant 0 : i32
    return %c0_i32, %c0_i32_0 : i32, i32
  }
  func.func @transform_3(%arg0: i32) -> (i32, i32) {
    %c0_i32 = arith.constant 0 : i32
    %c0_i32_0 = arith.constant 0 : i32
    %c0_i32_1 = arith.constant 0 : i32
    return %c0_i32, %c0_i32_0 : i32, i32
  }
  func.func @transform_4(%arg0: i32) -> (i32, i32) {
    %c0_i32 = arith.constant 0 : i32
    %c0_i32_0 = arith.constant 0 : i32
    %c0_i32_1 = arith.constant 0 : i32
    return %c0_i32, %c0_i32_0 : i32, i32
  }
  func.func @transform_5(%arg0: i32) -> (i32, i32) {
    %c0_i32 = arith.constant 0 : i32
    %c0_i32_0 = arith.constant 0 : i32
    %c0_i32_1 = arith.constant 0 : i32
    return %c0_i32, %c0_i32_0 : i32, i32
  }
  func.func @transform_6(%arg0: i32) -> (i32, i32) {
    %c0_i32 = arith.constant 0 : i32
    %c0_i32_0 = arith.constant 0 : i32
    %c0_i32_1 = arith.constant 0 : i32
    return %c0_i32, %c0_i32_0 : i32, i32
  }
  func.func @transform_7(%arg0: i32) -> (i32, i32) {
    %c0_i32 = arith.constant 0 : i32
    %c0_i32_0 = arith.constant 0 : i32
    return %arg0, %c0_i32 : i32, i32
  }
}

</mosaic_0001>

<llo_original>
// kernel: discriminator_forward.1
$region0: #{discriminator_forward.1}
  #allocation0 [shape = 'u32[]', space=smem, size = 0x4, offset = 0x4, fixed_abs, tag = 'smem constant byte address 0x4 - core index']
  #allocation1 [shape = 'u32[144,128]{1,0:T(1,128)}', space=vmem, size = 0x12000, scoped, tag = 'internal scratch']
  %s0 = inlined_call_operand.vmem [shape: f32[8,16], index: 0, kind: input, shape index: {}]
  %s1 = inlined_call_operand.hbm [shape: f32[16,32], index: 1, kind: input, shape index: {}]
  %s2 = inlined_call_operand.vmem [shape: f32[1,32], index: 2, kind: input, shape index: {}]
  %s3 = inlined_call_operand.vmem [shape: f32[32,32], index: 3, kind: input, shape index: {}]
  %s4 = inlined_call_operand.vmem [shape: f32[1,32], index: 4, kind: input, shape index: {}]
  %s5 = inlined_call_operand.vmem [shape: f32[32,2], index: 5, kind: input, shape index: {}]
  %s6 = inlined_call_operand.hbm [shape: f32[1,2], index: 6, kind: input, shape index: {}]
  %s7 = inlined_call_operand.vmem [shape: f32[8,2], index: 7, kind: output, shape index: {}]
  %s8 = sld [smem:[#allocation0]]
  $region46: #{discriminator_forward.1} parent=0
    _
  %s10 = ssub.s32 1, %s8
  %s11 = scalar_select 0, %s10, %s8
  $region1: #{discriminator_forward.1} parent=0
    #allocation2 [shape = 'u8[8192]{0}', space=vmem, size = 0x2000, scoped, tag = 'input window, operand 1, single buffered']
    #allocation3 [shape = 's32[1]{0}', space=sflag, size = 0x4, scoped, tag = 'scoped memory for discriminator_forward.1']
    #allocation4 [shape = 'u8[512]{0}', space=vmem, size = 0x400, scoped, tag = 'input window, operand 6, single buffered']
    #allocation5 [shape = 's32[1]{0}', space=sflag, size = 0x4, scoped, tag = 'scoped memory for discriminator_forward.1']
    %12 = vsyncpa [#allocation3], 0
    %13 = vsyncpa [#allocation5], 0
    // Predicated region
    $region2: #{discriminator_forward.1} parent=1 // pred_check
      _
    $region3: #{discriminator_forward.1} parent=1 // pred_check_branch
      %15 = sbr.rel (0) target = $region5
    $region4: #{discriminator_forward.1} parent=1 // pred_region
      _
    $region5: #{discriminator_forward.1} parent=1 // pred_fallthru
      _
    // Predicated region
    $region6: #{discriminator_forward.1} parent=1 // pred_check
      _
    $region7: #{discriminator_forward.1} parent=1 // pred_check_branch
      %17 = sbr.rel (0) target = $region9
    $region8: #{discriminator_forward.1} parent=1 // pred_region
      %s19 = ssub.s32 256, 256
      %20 = vsyncadd [#allocation3], %s19
      %s21 = sshll.u32 [#allocation2], 4
      %s22 = int_to_ptr.vmem [resolvable:$true] %s21
      %27 = dma.hbm_to_vmem [thread:$0]  %s1, 256, %s22, [#allocation3], 128, 128, 8
    $region9: #{discriminator_forward.1} parent=1 // pred_fallthru
      _
    // Predicated region
    $region10: #{discriminator_forward.1} parent=1 // pred_check
      _
    $region11: #{discriminator_forward.1} parent=1 // pred_check_branch
      %29 = sbr.rel (0) target = $region13
    $region12: #{discriminator_forward.1} parent=1 // pred_region
      _
    $region13: #{discriminator_forward.1} parent=1 // pred_fallthru
      _
    // Predicated region
    $region14: #{discriminator_forward.1} parent=1 // pred_check
      _
    $region15: #{discriminator_forward.1} parent=1 // pred_check_branch
      %31 = sbr.rel (0) target = $region17
    $region16: #{discriminator_forward.1} parent=1 // pred_region
      _
    $region17: #{discriminator_forward.1} parent=1 // pred_fallthru
      _
    // Predicated region
    $region18: #{discriminator_forward.1} parent=1 // pred_check
      _
    $region19: #{discriminator_forward.1} parent=1 // pred_check_branch
      %33 = sbr.rel (0) target = $region21
    $region20: #{discriminator_forward.1} parent=1 // pred_region
      _
    $region21: #{discriminator_forward.1} parent=1 // pred_fallthru
      _
    // Predicated region
    $region22: #{discriminator_forward.1} parent=1 // pred_check
      _
    $region23: #{discriminator_forward.1} parent=1 // pred_check_branch
      %35 = sbr.rel (0) target = $region25
    $region24: #{discriminator_forward.1} parent=1 // pred_region
      _
    $region25: #{discriminator_forward.1} parent=1 // pred_fallthru
      _
    // Predicated region
    $region26: #{discriminator_forward.1} parent=1 // pred_check
      _
    $region27: #{discriminator_forward.1} parent=1 // pred_check_branch
      %37 = sbr.rel (0) target = $region29
    $region28: #{discriminator_forward.1} parent=1 // pred_region
      %s39 = ssub.s32 16, 16
      %40 = vsyncadd [#allocation5], %s39
      %s42 = sshll.u32 [#allocation4], 4
      %s43 = int_to_ptr.vmem [resolvable:$true] %s42
      %45 = dma.hbm_to_vmem [thread:$0]  %s6, 16, %s43, [#allocation5]
    $region29: #{discriminator_forward.1} parent=1 // pred_fallthru
      _
    // Predicated region
    $region30: #{discriminator_forward.1} parent=1 // pred_check
      _
    $region31: #{discriminator_forward.1} parent=1 // pred_check_branch
      %47 = sbr.rel (0) target = $region33
    $region32: #{discriminator_forward.1} parent=1 // pred_region
      %48 = dma.done [#allocation3], 256
    $region33: #{discriminator_forward.1} parent=1 // pred_fallthru
      _
    // Predicated region
    $region34: #{discriminator_forward.1} parent=1 // pred_check
      _
    $region35: #{discriminator_forward.1} parent=1 // pred_check_branch
      %50 = sbr.rel (0) target = $region37
    $region36: #{discriminator_forward.1} parent=1 // pred_region
      %51 = dma.done [#allocation5], 16
    $region37: #{discriminator_forward.1} parent=1 // pred_fallthru
      _
    %v52 = vld [vmem:[%s0] sm:$0xff]
    %v53 = vld [vmem:[#allocation2] sm:$0xff]
    %v54 = vld [vmem:[#allocation2 + $0x8] sm:$0xff]
    %v55 = vld [vmem:[%s2] sm:$0x1]
    %v57 = vlaneseq
    %v58 = vshrl.u32 %v57, 7
    %v59 = vsub.s32 0, %v58
    %v60 = vrot.slane %v55, %v59
    %vm62 = vcmask 130048
    %v64 = vsel %vm62, %v52, 0
    %66 = vmatprep.subr.mxu0 0.0
    %67 = vmatpush1.msra.mxu0 0.0
    %68 = vmatprep.subr.mxu0 0.0
    %69 = vmatpush1.msra.mxu0 0.0
    %70 = vmatprep.subr.mxu0 0.0
    %71 = vmatpush1.msra.mxu0 0.0
    %72 = vmatprep.subr.mxu0 0.0
    %73 = vmatpush1.msra.mxu0 0.0
    %74 = vmatprep.subr.mxu0 0.0
    %75 = vmatpush1.msra.mxu0 0.0
    %76 = vmatprep.subr.mxu0 0.0
    %77 = vmatpush1.msra.mxu0 0.0
    %78 = vmatprep.subr.mxu0 0.0
    %79 = vmatpush1.msra.mxu0 0.0
    %80 = vmatprep.subr.mxu0 0.0
    %81 = vmatpush1.msra.mxu0 0.0
    %82 = vmatprep.subr.mxu0 0.0
    %83 = vmatpush1.msra.mxu0 0.0
    %84 = vmatprep.subr.mxu0 0.0
    %85 = vmatpush1.msra.mxu0 0.0
    %86 = vmatprep.subr.mxu0 0.0
    %87 = vmatpush1.msra.mxu0 0.0
    %88 = vmatprep.subr.mxu0 0.0
    %89 = vmatpush1.msra.mxu0 0.0
    %90 = vmatprep.subr.mxu0 0.0
    %91 = vmatpush1.msra.mxu0 0.0
    %92 = vmatprep.subr.mxu0 0.0
    %93 = vmatpush1.msra.mxu0 0.0
    %94 = vmatprep.subr.mxu0 0.0
    %95 = vmatpush1.msra.mxu0 %v54
    %96 = vmatprep.subr.mxu0 0.0
    %97 = vmatpush1.msra.mxu0 %v53
    %98 = vmatprep.subr.mxu0 0.0
    %99 = vmatpush2.msra.mxu0 0.0
    %100 = vmatprep.subr.mxu0 0.0
    %101 = vmatpush2.msra.mxu0 0.0
    %102 = vmatprep.subr.mxu0 0.0
    %103 = vmatpush2.msra.mxu0 0.0
    %104 = vmatprep.subr.mxu0 0.0
    %105 = vmatpush2.msra.mxu0 0.0
    %106 = vmatprep.subr.mxu0 0.0
    %107 = vmatpush2.msra.mxu0 0.0
    %108 = vmatprep.subr.mxu0 0.0
    %109 = vmatpush2.msra.mxu0 0.0
    %110 = vmatprep.subr.mxu0 0.0
    %111 = vmatpush2.msra.mxu0 0.0
    %112 = vmatprep.subr.mxu0 0.0
    %113 = vmatpush2.msra.mxu0 0.0
    %114 = vmatprep.subr.mxu0 0.0
    %115 = vmatpush2.msra.mxu0 0.0
    %116 = vmatprep.subr.mxu0 0.0
    %117 = vmatpush2.msra.mxu0 0.0
    %118 = vmatprep.subr.mxu0 0.0
    %119 = vmatpush2.msra.mxu0 0.0
    %120 = vmatprep.subr.mxu0 0.0
    %121 = vmatpush2.msra.mxu0 0.0
    %122 = vmatprep.subr.mxu0 0.0
    %123 = vmatpush2.msra.mxu0 0.0
    %124 = vmatprep.subr.mxu0 0.0
    %125 = vmatpush2.msra.mxu0 0.0
    %126 = vmatprep.subr.mxu0 0.0
    %127 = vmatpush2.msra.mxu0 0.0
    %128 = vmatprep.subr.mxu0 0.0
    %129 = vmatpush2.msra.mxu0 0.0
    %130 = vmatprep.mubr.f32.mxu0 0.0
    %131 = vmatmul.mubr.f32.gmra.mxu0 %v64
    %v132 = vpop.f32.mrf.mxu0
    %v133 = vadd.f32 %v60, %v132
    %v134 = vpop.f32.mrf.mxu0
    %135 = vdwg.mxu0
    %v136 = vmax.f32 %v133, 0.0
    %v137 = vld [vmem:[%s3] sm:$0xff]
    %v138 = vld [vmem:[%s3 + $0x8] sm:$0xff]
    %v139 = vld [vmem:[%s3 + $0x10] sm:$0xff]
    %v140 = vld [vmem:[%s3 + $0x18] sm:$0xff]
    %v141 = vld [vmem:[%s4] sm:$0x1]
    %v143 = vlaneseq
    %v144 = vshrl.u32 %v143, 7
    %v145 = vsub.s32 0, %v144
    %v146 = vrot.slane %v141, %v145
    %vm148 = vcmask 261120
    %v150 = vsel %vm148, %v136, 0
    %152 = vmatprep.subr.mxu0 0.0
    %153 = vmatpush1.msra.mxu0 0.0
    %154 = vmatprep.subr.mxu0 0.0
    %155 = vmatpush1.msra.mxu0 0.0
    %156 = vmatprep.subr.mxu0 0.0
    %157 = vmatpush1.msra.mxu0 0.0
    %158 = vmatprep.subr.mxu0 0.0
    %159 = vmatpush1.msra.mxu0 0.0
    %160 = vmatprep.subr.mxu0 0.0
    %161 = vmatpush1.msra.mxu0 0.0
    %162 = vmatprep.subr.mxu0 0.0
    %163 = vmatpush1.msra.mxu0 0.0
    %164 = vmatprep.subr.mxu0 0.0
    %165 = vmatpush1.msra.mxu0 0.0
    %166 = vmatprep.subr.mxu0 0.0
    %167 = vmatpush1.msra.mxu0 0.0
    %168 = vmatprep.subr.mxu0 0.0
    %169 = vmatpush1.msra.mxu0 0.0
    %170 = vmatprep.subr.mxu0 0.0
    %171 = vmatpush1.msra.mxu0 0.0
    %172 = vmatprep.subr.mxu0 0.0
    %173 = vmatpush1.msra.mxu0 0.0
    %174 = vmatprep.subr.mxu0 0.0
    %175 = vmatpush1.msra.mxu0 0.0
    %176 = vmatprep.subr.mxu0 0.0
    %177 = vmatpush1.msra.mxu0 %v140
    %178 = vmatprep.subr.mxu0 0.0
    %179 = vmatpush1.msra.mxu0 %v139
    %180 = vmatprep.subr.mxu0 0.0
    %181 = vmatpush1.msra.mxu0 %v138
    %182 = vmatprep.subr.mxu0 0.0
    %183 = vmatpush1.msra.mxu0 %v137
    %184 = vmatprep.subr.mxu0 0.0
    %185 = vmatpush2.msra.mxu0 0.0
    %186 = vmatprep.subr.mxu0 0.0
    %187 = vmatpush2.msra.mxu0 0.0
    %188 = vmatprep.subr.mxu0 0.0
    %189 = vmatpush2.msra.mxu0 0.0
    %190 = vmatprep.subr.mxu0 0.0
    %191 = vmatpush2.msra.mxu0 0.0
    %192 = vmatprep.subr.mxu0 0.0
    %193 = vmatpush2.msra.mxu0 0.0
    %194 = vmatprep.subr.mxu0 0.0
    %195 = vmatpush2.msra.mxu0 0.0
    %196 = vmatprep.subr.mxu0 0.0
    %197 = vmatpush2.msra.mxu0 0.0
    %198 = vmatprep.subr.mxu0 0.0
    %199 = vmatpush2.msra.mxu0 0.0
    %200 = vmatprep.subr.mxu0 0.0
    %201 = vmatpush2.msra.mxu0 0.0
    %202 = vmatprep.subr.mxu0 0.0
    %203 = vmatpush2.msra.mxu0 0.0
    %204 = vmatprep.subr.mxu0 0.0
    %205 = vmatpush2.msra.mxu0 0.0
    %206 = vmatprep.subr.mxu0 0.0
    %207 = vmatpush2.msra.mxu0 0.0
    %208 = vmatprep.subr.mxu0 0.0
    %209 = vmatpush2.msra.mxu0 0.0
    %210 = vmatprep.subr.mxu0 0.0
    %211 = vmatpush2.msra.mxu0 0.0
    %212 = vmatprep.subr.mxu0 0.0
    %213 = vmatpush2.msra.mxu0 0.0
    %214 = vmatprep.subr.mxu0 0.0
    %215 = vmatpush2.msra.mxu0 0.0
    %216 = vmatprep.mubr.f32.mxu0 0.0
    %217 = vmatmul.mubr.f32.gmra.mxu0 %v150
    %v218 = vpop.f32.mrf.mxu0
    %v219 = vadd.f32 %v146, %v218
    %v220 = vpop.f32.mrf.mxu0
    %221 = vdwg.mxu0
    %v222 = vmax.f32 %v219, 0.0
    %v223 = vld [vmem:[%s5] sm:$0xff]
    %v224 = vld [vmem:[%s5 + $0x8] sm:$0xff]
    %v225 = vld [vmem:[%s5 + $0x10] sm:$0xff]
    %v226 = vld [vmem:[%s5 + $0x18] sm:$0xff]
    %v227 = vld [vmem:[#allocation4] sm:$0x1]
    %v229 = vlaneseq
    %v230 = vshrl.u32 %v229, 7
    %v231 = vsub.s32 0, %v230
    %v232 = vrot.slane %v227, %v231
    %v235 = vsel %vm148, %v222, 0
    %237 = vmatprep.subr.mxu0 0.0
    %238 = vmatpush1.msra.mxu0 0.0
    %239 = vmatprep.subr.mxu0 0.0
    %240 = vmatpush1.msra.mxu0 0.0
    %241 = vmatprep.subr.mxu0 0.0
    %242 = vmatpush1.msra.mxu0 0.0
    %243 = vmatprep.subr.mxu0 0.0
    %244 = vmatpush1.msra.mxu0 0.0
    %245 = vmatprep.subr.mxu0 0.0
    %246 = vmatpush1.msra.mxu0 0.0
    %247 = vmatprep.subr.mxu0 0.0
    %248 = vmatpush1.msra.mxu0 0.0
    %249 = vmatprep.subr.mxu0 0.0
    %250 = vmatpush1.msra.mxu0 0.0
    %251 = vmatprep.subr.mxu0 0.0
    %252 = vmatpush1.msra.mxu0 0.0
    %253 = vmatprep.subr.mxu0 0.0
    %254 = vmatpush1.msra.mxu0 0.0
    %255 = vmatprep.subr.mxu0 0.0
    %256 = vmatpush1.msra.mxu0 0.0
    %257 = vmatprep.subr.mxu0 0.0
    %258 = vmatpush1.msra.mxu0 0.0
    %259 = vmatprep.subr.mxu0 0.0
    %260 = vmatpush1.msra.mxu0 0.0
    %261 = vmatprep.subr.mxu0 0.0
    %262 = vmatpush1.msra.mxu0 %v226
    %263 = vmatprep.subr.mxu0 0.0
    %264 = vmatpush1.msra.mxu0 %v225
    %265 = vmatprep.subr.mxu0 0.0
    %266 = vmatpush1.msra.mxu0 %v224
    %267 = vmatprep.subr.mxu0 0.0
    %268 = vmatpush1.msra.mxu0 %v223
    %269 = vmatprep.subr.mxu0 0.0
    %270 = vmatpush2.msra.mxu0 0.0
    %271 = vmatprep.subr.mxu0 0.0
    %272 = vmatpush2.msra.mxu0 0.0
    %273 = vmatprep.subr.mxu0 0.0
    %274 = vmatpush2.msra.mxu0 0.0
    %275 = vmatprep.subr.mxu0 0.0
    %276 = vmatpush2.msra.mxu0 0.0
    %277 = vmatprep.subr.mxu0 0.0
    %278 = vmatpush2.msra.mxu0 0.0
    %279 = vmatprep.subr.mxu0 0.0
    %280 = vmatpush2.msra.mxu0 0.0
    %281 = vmatprep.subr.mxu0 0.0
    %282 = vmatpush2.msra.mxu0 0.0
    %283 = vmatprep.subr.mxu0 0.0
    %284 = vmatpush2.msra.mxu0 0.0
    %285 = vmatprep.subr.mxu0 0.0
    %286 = vmatpush2.msra.mxu0 0.0
    %287 = vmatprep.subr.mxu0 0.0
    %288 = vmatpush2.msra.mxu0 0.0
    %289 = vmatprep.subr.mxu0 0.0
    %290 = vmatpush2.msra.mxu0 0.0
    %291 = vmatprep.subr.mxu0 0.0
    %292 = vmatpush2.msra.mxu0 0.0
    %293 = vmatprep.subr.mxu0 0.0
    %294 = vmatpush2.msra.mxu0 0.0
    %295 = vmatprep.subr.mxu0 0.0
    %296 = vmatpush2.msra.mxu0 0.0
    %297 = vmatprep.subr.mxu0 0.0
    %298 = vmatpush2.msra.mxu0 0.0
    %299 = vmatprep.subr.mxu0 0.0
    %300 = vmatpush2.msra.mxu0 0.0
    %301 = vmatprep.mubr.f32.mxu0 0.0
    %302 = vmatmul.mubr.f32.gmra.mxu0 %v235
    %v303 = vpop.f32.mrf.mxu0
    %v304 = vadd.f32 %v232, %v303
    %v305 = vpop.f32.mrf.mxu0
    %306 = vdwg.mxu0
    %v307 = vtanh.pop %v304
    %v308 = vmul.f32 %v307, 2.0
    %vm309 = vcmask 15360
    %310 = vst.msk [vmem:[%s7] sm:$0xff] %vm309, %v308
    // Predicated region
    $region38: #{discriminator_forward.1} parent=1 // pred_check
      _
    $region39: #{discriminator_forward.1} parent=1 // pred_check_branch
      %312 = sbr.rel (0) target = $region41
    $region40: #{discriminator_forward.1} parent=1 // pred_region
      _
    $region41: #{discriminator_forward.1} parent=1 // pred_fallthru
      _
    // Predicated region
    $region42: #{discriminator_forward.1} parent=1 // pred_check
      _
    $region43: #{discriminator_forward.1} parent=1 // pred_check_branch
      %314 = sbr.rel (0) target = $region45
    $region44: #{discriminator_forward.1} parent=1 // pred_region
      _
    $region45: #{discriminator_forward.1} parent=1 // pred_fallthru
      _
    %315 = vsyncpa [#allocation3], 1
    %316 = vsyncpa [#allocation5], 1

</llo_original>
